<compile_context>
chip_gen: v7x
topology: tpu7x:2x2x1
jax: 0.10.0
libtpu: 0.0.40
codegen_flags: <defaults>
</compile_context>

<pallas_src>
import jax
import jax.numpy as jnp
from jax.experimental import pallas as pl
from jax.experimental.pallas import tpu as pltpu


_NEG = -1e30  # finite additive mask for out-of-range time steps (no inf-inf NaN)


def _round_up(x, m):
    return (x + m - 1) // m * m


def _vmem_budget():
    """Per-generation usable VMEM: (tile budget, explicit compiler limit)."""
    try:
        cap = int(pltpu.get_tpu_info().vmem_capacity_bytes)
    except Exception:
        cap = 64 * 1024 * 1024          # conservative (v7x-sized) fallback
    vmem_limit = cap * 3 // 4            # ~96 MiB on v5e/v6e, ~48 MiB on v7x
    tile_budget = int(vmem_limit * 0.85)  # headroom for compiler-internal scratch
    return tile_budget, vmem_limit


def _choose_tiles(B, T, D, itemsize):
    """Pick (BB, TT, vmem_limit): batch block, time tile, compiler VMEM limit."""
    tile_budget, vmem_limit = _vmem_budget()
    d_lanes = _round_up(D, 128)          # lane padding of acc scratch / out buffers

    def step_bytes(bb, tt):
        tt_lanes = _round_up(tt, 128)
        feat = 2 * bb * tt * D * itemsize               # double-buffered feature tile
        temp = 2 * bb * tt * D * max(itemsize, 4)       # tanh(f) / masked-copy temporaries
        rows = 6 * bb * tt_lanes * 4                    # mask (x2 buf) + s + p (+ slack)
        outs = bb * d_lanes * (4 + 2 * itemsize)        # f32 acc scratch + out buffers
        return feat + temp + rows + outs + (1 << 20)    # +1 MiB fixed slack

    # --- time tile: single full-extent tile when T is small, else mult. of 256.
    TT = T if T <= 1024 else 512
    while TT < T and TT > 128 and step_bytes(1, TT) > tile_budget:
        TT //= 2                                        # stays a multiple of 128

    # --- batch block: grow (powers of 2), but keep >= 2 batch blocks so the
    # "parallel" axis feeds both v7x TensorCores.
    bb_cap = max(1, B // 2)
    BB = 1
    while BB * 2 <= bb_cap and step_bytes(BB * 2, TT) <= tile_budget:
        BB *= 2

    # --- if BB is capped and the feature tile is still small, grow TT
    # (multiples of 256) toward the ~8 MiB double-buffered target.
    target = 8 * 1024 * 1024
    while (TT < T and 2 * BB * TT * D * itemsize < target
           and step_bytes(BB, TT * 2) <= tile_budget):
        TT *= 2
    if TT >= T:
        TT = T                                          # single full-extent tile

    return BB, TT, vmem_limit


def _make_kernel(T, TT):
    tail = (T % TT) != 0   # static: tail-masking code only emitted when needed

    def sap_kernel(feat_ref, mask_ref, w_ref, out_ref, m_sc, l_sc, acc_sc):
        # feat_ref: (BB, TT, D)   mask_ref: (BB, 1, TT)   w_ref: (BB, 1, D)
        # out_ref : (BB, 1, D)
        # scratch : m_sc / l_sc (BB, 1, 1) f32, acc_sc (BB, 1, D) f32
        ti = pl.program_id(1)

        @pl.when(ti == 0)
        def _init():
            m_sc[...] = jnp.full_like(m_sc, _NEG)
            l_sc[...] = jnp.zeros_like(l_sc)
            acc_sc[...] = jnp.zeros_like(acc_sc)

        x = feat_ref[...]                                   # (BB, TT, D), native dtype
        mask = mask_ref[...]                                # (BB, 1, TT), f32

        if tail:
            # The last time tile reads past T; the out-of-bounds data is
            # unspecified.  Zero those feature rows and clamp their logits.
            # (One extra VPU select per tile, hidden under the feature DMA.)
            t0 = ti * TT
            t_ids = t0 + jax.lax.broadcasted_iota(jnp.int32, (1, TT, 1), 1)
            k_ids = t0 + jax.lax.broadcasted_iota(jnp.int32, (1, 1, TT), 2)
            x = jnp.where(t_ids < T, x, jnp.zeros((), x.dtype))
            mask = jnp.where(k_ids < T, mask, _NEG)

        f = jnp.tanh(x)                                     # (BB, TT, D)

        # Attention logits for this time tile, T on lanes, on the MXU:
        #   s[b, 0, t] = sum_d w[d] * tanh(feature)[b, t, d]
        s = jnp.einsum("bqd,bkd->bqk", w_ref[...], f,
                       preferred_element_type=jnp.float32) + mask   # (BB, 1, TT)
        # NB: the Linear bias is omitted — softmax over T is shift-invariant.

        # Flash-style online softmax carried across time tiles in VMEM scratch.
        m_prev = m_sc[...]
        m_new = jnp.maximum(m_prev, s.max(axis=-1, keepdims=True))  # (BB, 1, 1)
        alpha = jnp.exp(m_prev - m_new)
        p = jnp.exp(s - m_new)                                      # (BB, 1, TT)
        l_sc[...] = alpha * l_sc[...] + p.sum(axis=-1, keepdims=True)
        acc_sc[...] = alpha * acc_sc[...] + jnp.einsum(
            "bqk,bkd->bqd", p.astype(f.dtype), f,
            preferred_element_type=jnp.float32)                     # (BB, 1, D)
        m_sc[...] = m_new

        @pl.when(ti == pl.num_programs(1) - 1)
        def _finalize():
            inv_l = pl.reciprocal(l_sc[...], approx=False)          # EUP, negligible cost
            out_ref[...] = (acc_sc[...] * inv_l).astype(out_ref.dtype)

    return sap_kernel


def sap_forward(feature, att_mask, w, b=None):
    """feature: [B,T,D], att_mask: [B,T] additive logits, w: [1,D], b: [1] -> [B,D].

    `b` is accepted for API parity but unused: adding a constant bias to every
    logit is a no-op through the softmax (shift invariance).  Pass bf16
    features to halve HBM traffic; softmax / accumulation stay f32.
    """
    del b
    B, T, D = feature.shape
    att_mask = jnp.asarray(att_mask)
    if att_mask.ndim == 3:                      # accept the [B,T,1] documented shape
        att_mask = att_mask[..., 0]
    itemsize = jnp.dtype(feature.dtype).itemsize
    BB, TT, vmem_limit = _choose_tiles(B, T, D, itemsize)

    mask3 = att_mask.astype(jnp.float32).reshape(B, 1, T)
    # Pre-broadcast the (tiny) weight row: no per-grid-step broadcast_in_dim in
    # the kernel; constant block index -> DMA'd only when needed.
    w3 = jnp.broadcast_to(w.reshape(1, 1, D).astype(feature.dtype), (BB, 1, D))

    grid = (pl.cdiv(B, BB), pl.cdiv(T, TT))

    cost = pl.CostEstimate(
        flops=4 * B * T * D,                       # two thin (q = 1) matmuls
        transcendentals=B * T * (D + 1),           # tanh + exp
        bytes_accessed=B * T * D * itemsize + B * T * 4 + B * D * itemsize,
    )

    out3 = pl.pallas_call(
        _make_kernel(T, TT),
        out_shape=jax.ShapeDtypeStruct((B, 1, D), feature.dtype),
        grid_spec=pltpu.PrefetchScalarGridSpec(
            num_scalar_prefetch=0,
            grid=grid,
            in_specs=[
                pl.BlockSpec((BB, TT, D), lambda bi, ti: (bi, ti, 0)),   # feature
                pl.BlockSpec((BB, 1, TT), lambda bi, ti: (bi, 0, ti)),   # att mask
                pl.BlockSpec((BB, 1, D), lambda bi, ti: (0, 0, 0)),      # W (broadcast)
            ],
            out_specs=pl.BlockSpec((BB, 1, D), lambda bi, ti: (bi, 0, 0)),
            scratch_shapes=[
                pltpu.VMEM((BB, 1, 1), jnp.float32),   # running max  m
                pltpu.VMEM((BB, 1, 1), jnp.float32),   # running denom l
                pltpu.VMEM((BB, 1, D), jnp.float32),   # output accumulator
            ],
        ),
        compiler_params=pltpu.CompilerParams(
            dimension_semantics=("parallel", "arbitrary"),
            vmem_limit_bytes=int(vmem_limit)),
        cost_estimate=cost,
    )(feature, mask3, w3)

    return out3[:, 0, :]


def sap_reference(feature, att_mask, w, b):
    f = jnp.tanh(feature.astype(jnp.float32))
    att_logits = jnp.einsum("btd,d->bt", f, w.reshape(-1).astype(jnp.float32))
    att_logits = att_logits + b.reshape(()).astype(jnp.float32)
    att_logits = att_mask.astype(jnp.float32) + att_logits
    att_w = jax.nn.softmax(att_logits, axis=-1)[..., None]
    return jnp.sum(f * att_w, axis=1)


if __name__ == "__main__":
    B, T, D = 2, 8, 32
    key = jax.random.PRNGKey(0)
    k_feat, k_mask, k_w, k_b = jax.random.split(key, 4)

    feature = jax.random.normal(k_feat, (B, T, D), dtype=jnp.float32)
    # Additive attention-mask logits (0 = keep, large negative = pad).
    att_mask = jnp.where(
        jax.random.uniform(k_mask, (B, T)) > 0.25, 0.0, -1e4
    ).astype(jnp.float32)

    # nn.Linear(D, 1): weight [1, D], bias [1] — deterministic init.
    w = jax.random.normal(k_w, (1, D), dtype=jnp.float32) * (1.0 / jnp.sqrt(D))
    b = jax.random.normal(k_b, (1,), dtype=jnp.float32) * 0.01

    out = sap_forward(feature, att_mask, w, b)
    out = jax.block_until_ready(out)

    ref = sap_reference(feature, att_mask, w, b)
    assert out.shape == (B, D)
    # Tolerance covers MXU f32 pass precision.
    assert jnp.allclose(out, ref, atol=1e-2, rtol=1e-2), "mismatch vs reference"

    print("KERNEL_OK")
</pallas_src>

<mosaic_0001>
module attributes {stable_mosaic.version = 11 : i64} {
  func.func @sap_kernel(%arg0: i32, %arg1: i32, %arg2: memref<1x8x32xf32, #tpu.memory_space<vmem>>, %arg3: memref<1x1x8xf32, #tpu.memory_space<vmem>>, %arg4: memref<1x1x32xf32, #tpu.memory_space<vmem>>, %arg5: memref<1x1x32xf32, #tpu.memory_space<vmem>>, %arg6: memref<1x1x1xf32, #tpu.memory_space<vmem>>, %arg7: memref<1x1x1xf32, #tpu.memory_space<vmem>>, %arg8: memref<1x1x32xf32, #tpu.memory_space<vmem>>) attributes {dimension_semantics = [#tpu.dimension_semantics<parallel>, #tpu.dimension_semantics<arbitrary>], iteration_bounds = array<i64: 2, 1>, scalar_prefetch = 0 : i64, scratch_operands = 3 : i64, tpu.core_type = #tpu.core_type<tc>, window_params = [{transform_indices = @transform_0, window_bounds = array<i64: 1, 8, 32>}, {transform_indices = @transform_1, window_bounds = array<i64: 1, 1, 8>}, {pipeline_mode = #tpu.pipeline_mode<synchronous>, transform_indices = @transform_2, window_bounds = array<i64: 1, 1, 32>}, {transform_indices = @transform_3, window_bounds = array<i64: 1, 1, 32>}]} {
    %c0_i32 = arith.constant 0 : i32
    %0 = arith.cmpi eq, %arg1, %c0_i32 : i32
    %1 = arith.extui %0 : i1 to i32
    %c0_i32_0 = arith.constant 0 : i32
    %2 = arith.cmpi ne, %1, %c0_i32_0 : i32
    scf.if %2 {
      %cst_32 = arith.constant -1.000000e+30 : f32
      %34 = vector.broadcast %cst_32 : f32 to vector<1x1x1xf32>
      %c0_33 = arith.constant 0 : index
      %c0_34 = arith.constant 0 : index
      %c0_35 = arith.constant 0 : index
      %35 = vector.load %arg6[%c0_33, %c0_34, %c0_35] : memref<1x1x1xf32, #tpu.memory_space<vmem>>, vector<1x1x1xf32>
      tpu.vector_store %arg6[%c0_33, %c0_34, %c0_35], %34 {strides = array<i32>} : memref<1x1x1xf32, #tpu.memory_space<vmem>>, vector<1x1x1xf32>,
      %cst_36 = arith.constant 0.000000e+00 : f32
      %36 = vector.broadcast %cst_36 : f32 to vector<1x1x1xf32>
      %c0_37 = arith.constant 0 : index
      %c0_38 = arith.constant 0 : index
      %c0_39 = arith.constant 0 : index
      %37 = vector.load %arg7[%c0_37, %c0_38, %c0_39] : memref<1x1x1xf32, #tpu.memory_space<vmem>>, vector<1x1x1xf32>
      tpu.vector_store %arg7[%c0_37, %c0_38, %c0_39], %36 {strides = array<i32>} : memref<1x1x1xf32, #tpu.memory_space<vmem>>, vector<1x1x1xf32>,
      %cst_40 = arith.constant 0.000000e+00 : f32
      %38 = vector.broadcast %cst_40 : f32 to vector<1x1x32xf32>
      %c0_41 = arith.constant 0 : index
      %c0_42 = arith.constant 0 : index
      %c0_43 = arith.constant 0 : index
      %39 = vector.load %arg8[%c0_41, %c0_42, %c0_43] : memref<1x1x32xf32, #tpu.memory_space<vmem>>, vector<1x1x32xf32>
      tpu.vector_store %arg8[%c0_41, %c0_42, %c0_43], %38 {strides = array<i32>} : memref<1x1x32xf32, #tpu.memory_space<vmem>>, vector<1x1x32xf32>,
    } else {
    }
    %c0 = arith.constant 0 : index
    %c0_1 = arith.constant 0 : index
    %c0_2 = arith.constant 0 : index
    %3 = vector.load %arg2[%c0, %c0_1, %c0_2] : memref<1x8x32xf32, #tpu.memory_space<vmem>>, vector<1x8x32xf32>
    %c0_3 = arith.constant 0 : index
    %c0_4 = arith.constant 0 : index
    %c0_5 = arith.constant 0 : index
    %4 = vector.load %arg3[%c0_3, %c0_4, %c0_5] : memref<1x1x8xf32, #tpu.memory_space<vmem>>, vector<1x1x8xf32>
    %5 = math.tanh %3 : vector<1x8x32xf32>
    %c0_6 = arith.constant 0 : index
    %c0_7 = arith.constant 0 : index
    %c0_8 = arith.constant 0 : index
    %6 = vector.load %arg4[%c0_6, %c0_7, %c0_8] : memref<1x1x32xf32, #tpu.memory_space<vmem>>, vector<1x1x32xf32>
    "tpu.trace_start"() <{level = 10 : i32, message = "bqd,bkd->bqk"}> : () -> ()
    %cst = arith.constant dense<0.000000e+00> : vector<1x1x8xf32>
    %7 = tpu.matmul %6, %5, %cst {dimension_numbers = #tpu.dot_dimension_numbers<[2], [2], [1], [1], [0, 0, 0, 1, 1, 1], [0], [0]>} : vector<1x1x32xf32>, vector<1x8x32xf32>, vector<1x1x8xf32> -> vector<1x1x8xf32>
    "tpu.trace_stop"() : () -> ()
    %8 = arith.addf %7, %4 : vector<1x1x8xf32>
    %c0_9 = arith.constant 0 : index
    %c0_10 = arith.constant 0 : index
    %c0_11 = arith.constant 0 : index
    %9 = vector.load %arg6[%c0_9, %c0_10, %c0_11] : memref<1x1x1xf32, #tpu.memory_space<vmem>>, vector<1x1x1xf32>
    %cst_12 = arith.constant dense<0xFF800000> : vector<1x1xf32>
    %10 = vector.multi_reduction <maximumf>, %8, %cst_12 [2] : vector<1x1x8xf32> to vector<1x1xf32>
    %11 = vector.shape_cast %10 : vector<1x1xf32> to vector<1x1x1xf32>
    %12 = arith.maximumf %9, %11 : vector<1x1x1xf32>
    %13 = arith.subf %9, %12 : vector<1x1x1xf32>
    %14 = math.exp %13 : vector<1x1x1xf32>
    %15 = vector.broadcast %12 : vector<1x1x1xf32> to vector<1x1x8xf32>
    %16 = arith.subf %8, %15 : vector<1x1x8xf32>
    %17 = math.exp %16 : vector<1x1x8xf32>
    %c0_13 = arith.constant 0 : index
    %c0_14 = arith.constant 0 : index
    %c0_15 = arith.constant 0 : index
    %18 = vector.load %arg7[%c0_13, %c0_14, %c0_15] : memref<1x1x1xf32, #tpu.memory_space<vmem>>, vector<1x1x1xf32>
    %19 = arith.mulf %14, %18 : vector<1x1x1xf32>
    %cst_16 = arith.constant dense<0.000000e+00> : vector<1x1xf32>
    %20 = vector.multi_reduction <add>, %17, %cst_16 [2] : vector<1x1x8xf32> to vector<1x1xf32>
    %21 = vector.shape_cast %20 : vector<1x1xf32> to vector<1x1x1xf32>
    %22 = arith.addf %19, %21 : vector<1x1x1xf32>
    %c0_17 = arith.constant 0 : index
    %c0_18 = arith.constant 0 : index
    %c0_19 = arith.constant 0 : index
    %23 = vector.load %arg7[%c0_17, %c0_18, %c0_19] : memref<1x1x1xf32, #tpu.memory_space<vmem>>, vector<1x1x1xf32>
    tpu.vector_store %arg7[%c0_17, %c0_18, %c0_19], %22 {strides = array<i32>} : memref<1x1x1xf32, #tpu.memory_space<vmem>>, vector<1x1x1xf32>,
    %c0_20 = arith.constant 0 : index
    %c0_21 = arith.constant 0 : index
    %c0_22 = arith.constant 0 : index
    %24 = vector.load %arg8[%c0_20, %c0_21, %c0_22] : memref<1x1x32xf32, #tpu.memory_space<vmem>>, vector<1x1x32xf32>
    %25 = vector.broadcast %14 : vector<1x1x1xf32> to vector<1x1x32xf32>
    %26 = arith.mulf %25, %24 : vector<1x1x32xf32>
    "tpu.trace_start"() <{level = 10 : i32, message = "bqk,bkd->bqd"}> : () -> ()
    %cst_23 = arith.constant dense<0.000000e+00> : vector<1x1x32xf32>
    %27 = tpu.matmul %17, %5, %cst_23 {dimension_numbers = #tpu.dot_dimension_numbers<[2], [1], [1], [2], [0, 0, 0, 1, 1, 2], [0], [0]>} : vector<1x1x8xf32>, vector<1x8x32xf32>, vector<1x1x32xf32> -> vector<1x1x32xf32>
    "tpu.trace_stop"() : () -> ()
    %28 = arith.addf %26, %27 : vector<1x1x32xf32>
    %c0_24 = arith.constant 0 : index
    %c0_25 = arith.constant 0 : index
    %c0_26 = arith.constant 0 : index
    %29 = vector.load %arg8[%c0_24, %c0_25, %c0_26] : memref<1x1x32xf32, #tpu.memory_space<vmem>>, vector<1x1x32xf32>
    tpu.vector_store %arg8[%c0_24, %c0_25, %c0_26], %28 {strides = array<i32>} : memref<1x1x32xf32, #tpu.memory_space<vmem>>, vector<1x1x32xf32>,
    %c0_27 = arith.constant 0 : index
    %c0_28 = arith.constant 0 : index
    %c0_29 = arith.constant 0 : index
    %30 = vector.load %arg6[%c0_27, %c0_28, %c0_29] : memref<1x1x1xf32, #tpu.memory_space<vmem>>, vector<1x1x1xf32>
    tpu.vector_store %arg6[%c0_27, %c0_28, %c0_29], %12 {strides = array<i32>} : memref<1x1x1xf32, #tpu.memory_space<vmem>>, vector<1x1x1xf32>,
    %c0_i32_30 = arith.constant 0 : i32
    %31 = arith.cmpi eq, %arg1, %c0_i32_30 : i32
    %32 = arith.extui %31 : i1 to i32
    %c0_i32_31 = arith.constant 0 : i32
    %33 = arith.cmpi ne, %32, %c0_i32_31 : i32
    scf.if %33 {
      %c0_32 = arith.constant 0 : index
      %c0_33 = arith.constant 0 : index
      %c0_34 = arith.constant 0 : index
      %34 = vector.load %arg7[%c0_32, %c0_33, %c0_34] : memref<1x1x1xf32, #tpu.memory_space<vmem>>, vector<1x1x1xf32>
      %35 = tpu.reciprocal %34 : vector<1x1x1xf32> -> vector<1x1x1xf32>
      %c0_35 = arith.constant 0 : index
      %c0_36 = arith.constant 0 : index
      %c0_37 = arith.constant 0 : index
      %36 = vector.load %arg8[%c0_35, %c0_36, %c0_37] : memref<1x1x32xf32, #tpu.memory_space<vmem>>, vector<1x1x32xf32>
      %37 = vector.broadcast %35 : vector<1x1x1xf32> to vector<1x1x32xf32>
      %38 = arith.mulf %36, %37 : vector<1x1x32xf32>
      %c0_38 = arith.constant 0 : index
      %c0_39 = arith.constant 0 : index
      %c0_40 = arith.constant 0 : index
      %39 = vector.load %arg5[%c0_38, %c0_39, %c0_40] : memref<1x1x32xf32, #tpu.memory_space<vmem>>, vector<1x1x32xf32>
      tpu.vector_store %arg5[%c0_38, %c0_39, %c0_40], %38 {strides = array<i32>} : memref<1x1x32xf32, #tpu.memory_space<vmem>>, vector<1x1x32xf32>,
    } else {
    }
    return
  }
  func.func @transform_0(%arg0: i32, %arg1: i32) -> (i32, i32, i32) {
    %c0_i32 = arith.constant 0 : i32
    %c0_i32_0 = arith.constant 0 : i32
    return %arg0, %arg1, %c0_i32 : i32, i32, i32
  }
  func.func @transform_1(%arg0: i32, %arg1: i32) -> (i32, i32, i32) {
    %c0_i32 = arith.constant 0 : i32
    %c0_i32_0 = arith.constant 0 : i32
    return %arg0, %c0_i32, %arg1 : i32, i32, i32
  }
  func.func @transform_2(%arg0: i32, %arg1: i32) -> (i32, i32, i32) {
    %c0_i32 = arith.constant 0 : i32
    %c0_i32_0 = arith.constant 0 : i32
    %c0_i32_1 = arith.constant 0 : i32
    %c0_i32_2 = arith.constant 0 : i32
    return %c0_i32, %c0_i32_0, %c0_i32_1 : i32, i32, i32
  }
  func.func @transform_3(%arg0: i32, %arg1: i32) -> (i32, i32, i32) {
    %c0_i32 = arith.constant 0 : i32
    %c0_i32_0 = arith.constant 0 : i32
    %c0_i32_1 = arith.constant 0 : i32
    return %arg0, %c0_i32, %c0_i32_0 : i32, i32, i32
  }
}

</mosaic_0001>

<llo_original>
// kernel: tpu_custom_call.1
$region0: #{tpu_custom_call.1}
  #allocation0 [shape = 'u32[]', space=smem, size = 0x4, offset = 0x4, fixed_abs, tag = 'smem constant byte address 0x4 - core index']
  #allocation1 [shape = 'u32[144,128]{1,0:T(1,128)}', space=vmem, size = 0x12000, scoped, tag = 'internal scratch']
  #allocation2 [shape = 'f32[1,1,1]{2,1,0:T(1,128)}', space=vmem, size = 0x200, scoped, tag = 'scratch operand']
  #allocation3 [shape = 'f32[1,1,1]{2,1,0:T(1,128)}', space=vmem, size = 0x200, scoped, tag = 'scratch operand']
  #allocation4 [shape = 'f32[1,1,32]{2,1,0:T(1,128)}', space=vmem, size = 0x200, scoped, tag = 'scratch operand']
  %s0 = inlined_call_operand.hbm [shape: f32[2,8,32], index: 0, kind: input, shape index: {}]
  %s1 = inlined_call_operand.vmem [shape: f32[2,1,8], index: 1, kind: input, shape index: {}]
  %s2 = inlined_call_operand.vmem [shape: f32[1,1,32], index: 2, kind: input, shape index: {}]
  %s3 = inlined_call_operand.hbm [shape: f32[2,1,32], index: 3, kind: output, shape index: {}]
  %s4 = sld [smem:[#allocation0]]
  $region57: #{tpu_custom_call.1} parent=0
    _
  %s6 = ssub.s32 1, %s4
  %s7 = scalar_select 0, %s6, %s4
  $region1: #{tpu_custom_call.1} parent=0
    #allocation5 [shape = 'u8[8192]{0}', space=vmem, size = 0x2000, scoped, tag = 'input window, operand 0']
    #allocation6 [shape = 's32[2]{0}', space=sflag, size = 0x8, scoped, tag = 'scoped memory for tpu_custom_call.1']
    #allocation7 [shape = 's32[2]{0}', space=sflag, size = 0x8, scoped, tag = 'scoped memory for tpu_custom_call.1']
    #allocation8 [shape = 'u8[1024]{0}', space=vmem, size = 0x400, scoped, tag = 'output window, operand 0']
    %8 = vsyncpa [#allocation6], 0
    %s9 = scalar_lea.sflag [#allocation6], 1
    %10 = vsyncpa %s9, 0
    %11 = vsyncpa [#allocation7], 0
    %s12 = scalar_lea.sflag [#allocation7], 1
    %13 = vsyncpa %s12, 0
    loop: start=0, step=1, limit=4
    $region2: #{tpu_custom_call.1} parent=1 // loop_pre_header
      _
    $region3: #{tpu_custom_call.1} parent=1 // loop_header
      %s15 = sphi 0, %s19
      %p16 = scmp.ge.s32.totalorder %s15, 4
      %s22 = sphi 0, %s34
      %s23 = sphi 0, %s30
      %s24 = sphi 0, %s22
      %s25 = sphi 0, %s23
      %s26 = sphi 0, %s24
      %s27 = sphi 0, %s25
      %s39 = sphi 0, %s41
      %s42 = sphi 0, %s39
      %s43 = sphi 0, %s42
      %s59 = sphi 0, %s43
      %s67 = sphi 0, %s69
      %s70 = sphi 0, %s67
      %s71 = sphi 0, %s70
      %s87 = sphi 0, %s71
      %s91 = sphi 0, %s91
      %s93 = sphi 0, %s91
      %s94 = sphi 0, %s93
      %s108 = sphi 0, %s94
      %s114 = sphi 0, %s116
      %s117 = sphi 0, %s114
      %s118 = sphi 0, %s117
      %s134 = sphi 0, %s118
    $region4: #{tpu_custom_call.1} parent=1 // loop_header_branch
      %18 = sbr.rel (%p16) target = $region8
    $region5: #{tpu_custom_call.1} parent=1 // loop_body
      %s20 = ssub.s32 %s15, 1
      %s21 = ssub.s32 %s15, 2
      %s28 = sadd.s32 1, %s23
      %p29 = scmp.ge.s32.totalorder %s28, 1
      %s30 = scalar_select %p29, 0, %s28
      %s31 = sadd.s32 1, %s22
      %s32 = scalar_select %p29, %s31, %s22
      %p33 = scmp.ge.s32.totalorder %s32, 2
      %s34 = scalar_select %p33, 0, %s32
      %s35 = ssub.s32 %s22, %s34
      %s36 = ssub.s32 %s23, %s30
      %s37 = sor.u32 %s35, %s36
      %p38 = scmp.eq.s32.totalorder %s37, 0
      %s40 = sadd.s32 %s39, 1
      %s41 = scalar_select %p38, %s39, %s40
      %p44 = pneg %p38
      %p45 = scmp.eq.s32.totalorder %s15, 1
      %p46 = por %p44, %p45
      %p47 = scmp.ne.s32.totalorder %s39, %s42
      %p48 = scmp.eq.s32.totalorder %s15, 0
      %p49 = por %p47, %p48
      %p50 = scmp.ne.s32.totalorder %s39, %s42
      %p51 = scmp.eq.s32.totalorder %s20, 1
      %p52 = por %p50, %p51
      %p53 = scmp.ne.s32.totalorder %s42, %s43
      %p54 = scmp.eq.s32.totalorder %s20, 0
      %p55 = por %p53, %p54
      %p56 = scmp.ne.s32.totalorder %s42, %s43
      %p57 = scmp.eq.s32.totalorder %s21, 1
      %p58 = por %p56, %p57
      %p60 = scmp.ne.s32.totalorder %s43, %s59
      %p61 = scmp.eq.s32.totalorder %s21, 0
      %p62 = por %p60, %p61
      %s63 = ssub.s32 %s22, %s34
      %s64 = ssub.s32 %s23, %s30
      %s65 = sor.u32 %s63, %s64
      %p66 = scmp.eq.s32.totalorder %s65, 0
      %s68 = sadd.s32 %s67, 1
      %s69 = scalar_select %p66, %s67, %s68
      %p72 = pneg %p66
      %p73 = scmp.eq.s32.totalorder %s15, 1
      %p74 = por %p72, %p73
      %p75 = scmp.ne.s32.totalorder %s67, %s70
      %p76 = scmp.eq.s32.totalorder %s15, 0
      %p77 = por %p75, %p76
      %p78 = scmp.ne.s32.totalorder %s67, %s70
      %p79 = scmp.eq.s32.totalorder %s20, 1
      %p80 = por %p78, %p79
      %p81 = scmp.ne.s32.totalorder %s70, %s71
      %p82 = scmp.eq.s32.totalorder %s20, 0
      %p83 = por %p81, %p82
      %p84 = scmp.ne.s32.totalorder %s70, %s71
      %p85 = scmp.eq.s32.totalorder %s21, 1
      %p86 = por %p84, %p85
      %p88 = scmp.ne.s32.totalorder %s71, %s87
      %p89 = scmp.eq.s32.totalorder %s21, 0
      %p90 = por %p88, %p89
      %s92 = sadd.s32 %s91, 1
      %p95 = scmp.eq.s32.totalorder %s15, 1
      %p96 = scmp.ne.s32.totalorder %s91, %s93
      %p97 = scmp.eq.s32.totalorder %s15, 0
      %p98 = por %p96, %p97
      %p99 = scmp.ne.s32.totalorder %s91, %s93
      %p100 = scmp.eq.s32.totalorder %s20, 1
      %p101 = por %p99, %p100
      %p102 = scmp.ne.s32.totalorder %s93, %s94
      %p103 = scmp.eq.s32.totalorder %s20, 0
      %p104 = por %p102, %p103
      %p105 = scmp.ne.s32.totalorder %s93, %s94
      %p106 = scmp.eq.s32.totalorder %s21, 1
      %p107 = por %p105, %p106
      %p109 = scmp.ne.s32.totalorder %s94, %s108
      %p110 = scmp.eq.s32.totalorder %s21, 0
      %p111 = por %p109, %p110
      %s112 = ssub.s32 %s22, %s34
      %p113 = scmp.eq.s32.totalorder %s112, 0
      %s115 = sadd.s32 %s114, 1
      %s116 = scalar_select %p113, %s114, %s115
      %p119 = pneg %p113
      %p120 = scmp.eq.s32.totalorder %s15, 1
      %p121 = por %p119, %p120
      %p122 = scmp.ne.s32.totalorder %s114, %s117
      %p123 = scmp.eq.s32.totalorder %s15, 0
      %p124 = por %p122, %p123
      %p125 = scmp.ne.s32.totalorder %s114, %s117
      %p126 = scmp.eq.s32.totalorder %s20, 1
      %p127 = por %p125, %p126
      %p128 = scmp.ne.s32.totalorder %s117, %s118
      %p129 = scmp.eq.s32.totalorder %s20, 0
      %p130 = por %p128, %p129
      %p131 = scmp.ne.s32.totalorder %s117, %s118
      %p132 = scmp.eq.s32.totalorder %s21, 1
      %p133 = por %p131, %p132
      %p135 = scmp.ne.s32.totalorder %s118, %s134
      %p136 = scmp.eq.s32.totalorder %s21, 0
      %p137 = por %p135, %p136
      %p138 = scmp.le.s32.totalorder 1, %s15
      %p139 = scmp.lt.s32.totalorder %s15, 3
      %p140 = pnand %p138, %p139
      %p141 = pneg %p140
      // Predicated region
      $region9: #{tpu_custom_call.1} parent=5 // pred_check
        _
      $region10: #{tpu_custom_call.1} parent=5 // pred_check_branch
        %143 = sbr.rel (%p140) target = $region12
      $region11: #{tpu_custom_call.1} parent=5 // pred_region
        %s144 = ssub.s32 %s15, 1
        // Predicated region
        $region13: #{tpu_custom_call.1} parent=11 // pred_check
          %p145 = pneg %p104
        $region14: #{tpu_custom_call.1} parent=11 // pred_check_branch
          %147 = sbr.rel (%p145) target = $region16
        $region15: #{tpu_custom_call.1} parent=11 // pred_region
          _
        $region16: #{tpu_custom_call.1} parent=11 // pred_fallthru
          _
      $region12: #{tpu_custom_call.1} parent=5 // pred_fallthru
        _
      %p148 = scmp.lt.s32.totalorder %s15, 2
      // Predicated region
      $region17: #{tpu_custom_call.1} parent=5 // pred_check
        %p149 = pneg %p148
      $region18: #{tpu_custom_call.1} parent=5 // pred_check_branch
        %151 = sbr.rel (%p149) target = $region20
      $region19: #{tpu_custom_call.1} parent=5 // pred_region
        // Predicated region
        $region21: #{tpu_custom_call.1} parent=19 // pred_check
          %p152 = pneg %p49
        $region22: #{tpu_custom_call.1} parent=19 // pred_check_branch
          %154 = sbr.rel (%p152) target = $region24
        $region23: #{tpu_custom_call.1} parent=19 // pred_region
          %s155 = sand.u32 %s39, 1
          %s156 = scalar_lea.sflag [#allocation6], %s155
          %s157 = sand.u32 %s39, 1
          %s158 = smul.addr %s157, 8
          %s159 = scalar_lea.vmem [#allocation5], %s158
          %s161 = ssub.s32 128, 128
          %162 = vsyncadd %s156, %s161
          %s163 = sadd.s32 %s23, %s22
          %s164 = smul.addr %s163, 128
          %s165 = scalar_lea.hbm %s0, %s164
          %s167 = sshll.u32 %s159, 4
          %s168 = int_to_ptr.vmem [resolvable:$true] %s167
          %170 = dma.hbm_to_vmem [thread:$0]  %s165, 128, %s168, %s156
        $region24: #{tpu_custom_call.1} parent=19 // pred_fallthru
          _
        // Predicated region
        $region25: #{tpu_custom_call.1} parent=19 // pred_check
          %p171 = pneg %p77
        $region26: #{tpu_custom_call.1} parent=19 // pred_check_branch
          %173 = sbr.rel (%p171) target = $region28
        $region27: #{tpu_custom_call.1} parent=19 // pred_region
          %p174 = scmp.lt.s32.totalorder %s22, 1
          %s175 = scalar_select %p174, %s22, 1
          %p176 = scmp.lt.s32.totalorder %s23, 0
          %s177 = scalar_select %p176, %s23, 0
          %s178 = sadd.s32 %s177, %s175
          %s179 = scalar_lea.vmem %s1, %s178
        $region28: #{tpu_custom_call.1} parent=19 // pred_fallthru
          _
      $region20: #{tpu_custom_call.1} parent=5 // pred_fallthru
        _
      %p180 = scmp.le.s32.totalorder 1, %s15
      %p181 = scmp.lt.s32.totalorder %s15, 3
      %p182 = pnand %p180, %p181
      %p183 = pneg %p182
      // Predicated region
      $region29: #{tpu_custom_call.1} parent=5 // pred_check
        _
      $region30: #{tpu_custom_call.1} parent=5 // pred_check_branch
        %185 = sbr.rel (%p182) target = $region32
      $region31: #{tpu_custom_call.1} parent=5 // pred_region
        %s186 = ssub.s32 %s15, 1
        %s187 = sand.u32 %s42, 1
        %s188 = scalar_lea.sflag [#allocation6], %s187
        %s189 = sand.u32 %s42, 1
        %s190 = smul.addr %s189, 8
        %s191 = scalar_lea.vmem [#allocation5], %s190
        // Predicated region
        $region33: #{tpu_custom_call.1} parent=31 // pred_check
          %p192 = pneg %p55
        $region34: #{tpu_custom_call.1} parent=31 // pred_check_branch
          %194 = sbr.rel (%p192) target = $region36
        $region35: #{tpu_custom_call.1} parent=31 // pred_region
          %195 = dma.done %s188, 128
        $region36: #{tpu_custom_call.1} parent=31 // pred_fallthru
          _
        %s196 = sand.u32 %s42, 1
        %s197 = scalar_lea.sflag [#allocation6], %s196
        %s198 = sand.u32 %s42, 1
        %s199 = smul.addr %s198, 8
        %s200 = scalar_lea.vmem [#allocation5], %s199
        %p201 = pneg %p55
        %p202 = pneg %p52
        %p203 = scmp.lt.s32.totalorder %s24, 1
        %s204 = scalar_select %p203, %s24, 1
        %p205 = scmp.lt.s32.totalorder %s25, 0
        %s206 = scalar_select %p205, %s25, 0
        %s207 = sadd.s32 %s206, %s204
        %s208 = scalar_lea.vmem %s1, %s207
        %p209 = pneg %p83
        %p210 = pneg %p80
        %p211 = pneg %p104
        %p212 = pneg %p101
        %p213 = pneg %p130
        %p214 = pneg %p127
        %s215 = sand.u32 %s117, 1
        %s216 = scalar_lea.sflag [#allocation7], %s215
        %s217 = sand.u32 %s117, 1
        %s218 = scalar_lea.vmem [#allocation8], %s217
        %p219 = scmp.lt.s32.totalorder %s24, 1
        %s220 = scalar_select %p219, %s24, 1
        %p221 = scmp.lt.s32.totalorder %s25, 0
        %s222 = scalar_select %p221, %s25, 0
        %s223 = sadd.s32 %s222, %s220
        %s224 = scalar_lea.vmem %s1, %s223
        %p225 = scmp.eq.s32.totalorder %s25, 0
        // Predicated region
        $region37: #{tpu_custom_call.1} parent=31 // pred_check
          %p226 = pneg %p225
        $region38: #{tpu_custom_call.1} parent=31 // pred_check_branch
          %228 = sbr.rel (%p226) target = $region40
        $region39: #{tpu_custom_call.1} parent=31 // pred_region
          %vm229 = vcmask 0
          %230 = vst.msk [vmem:[#allocation2] sm:$0x1] %vm229, -1e+30
          %231 = vst.msk [vmem:[#allocation3] sm:$0x1] %vm229, 0.0
          %vm232 = vcmask 253952
          %233 = vst.msk [vmem:[#allocation4] sm:$0x1] %vm232, 0.0
        $region40: #{tpu_custom_call.1} parent=31 // pred_fallthru
          _
        %v234 = vld [vmem:[%s191] sm:$0xff]
        %v235 = vld [vmem:[%s224] sm:$0x1]
        %v236 = vtanh.pop %v234
        %v237 = vld [vmem:[%s2] sm:$0x1]
        %vm238 = vcmask 261120
        %v240 = vsel %vm238, %v237, 0
        %v243 = vsel %vm238, %v236, 0
        %245 = vmatprep.subr.mxu0 0.0
        %246 = vmatpush1.xpose.msra.mxu0 %v243
        %247 = vmatprep.subr.mxu0 0.0
        %248 = vmatpush1.xpose.msra.mxu0 0.0
        %249 = vmatprep.subr.mxu0 0.0
        %250 = vmatpush1.xpose.msra.mxu0 0.0
        %251 = vmatprep.subr.mxu0 0.0
        %252 = vmatpush1.xpose.msra.mxu0 0.0
        %253 = vmatprep.subr.mxu0 0.0
        %254 = vmatpush1.xpose.msra.mxu0 0.0
        %255 = vmatprep.subr.mxu0 0.0
        %256 = vmatpush1.xpose.msra.mxu0 0.0
        %257 = vmatprep.subr.mxu0 0.0
        %258 = vmatpush1.xpose.msra.mxu0 0.0
        %259 = vmatprep.subr.mxu0 0.0
        %260 = vmatpush1.xpose.msra.mxu0 0.0
        %261 = vmatprep.subr.mxu0 0.0
        %262 = vmatpush1.xpose.msra.mxu0 0.0
        %263 = vmatprep.subr.mxu0 0.0
        %264 = vmatpush1.xpose.msra.mxu0 0.0
        %265 = vmatprep.subr.mxu0 0.0
        %266 = vmatpush1.xpose.msra.mxu0 0.0
        %267 = vmatprep.subr.mxu0 0.0
        %268 = vmatpush1.xpose.msra.mxu0 0.0
        %269 = vmatprep.subr.mxu0 0.0
        %270 = vmatpush1.xpose.msra.mxu0 0.0
        %271 = vmatprep.subr.mxu0 0.0
        %272 = vmatpush1.xpose.msra.mxu0 0.0
        %273 = vmatprep.subr.mxu0 0.0
        %274 = vmatpush1.xpose.msra.mxu0 0.0
        %275 = vmatprep.subr.mxu0 0.0
        %276 = vmatpush1.xpose.msra.mxu0 0.0
        %277 = vmatprep.subr.mxu0 0.0
        %278 = vmatpush1.xpose.msra.mxu0 0.0
        %279 = vmatprep.subr.mxu0 0.0
        %280 = vmatpush1.xpose.msra.mxu0 0.0
        %281 = vmatprep.subr.mxu0 0.0
        %282 = vmatpush1.xpose.msra.mxu0 0.0
        %283 = vmatprep.subr.mxu0 0.0
        %284 = vmatpush1.xpose.msra.mxu0 0.0
        %285 = vmatprep.subr.mxu0 0.0
        %286 = vmatpush1.xpose.msra.mxu0 0.0
        %287 = vmatprep.subr.mxu0 0.0
        %288 = vmatpush1.xpose.msra.mxu0 0.0
        %289 = vmatprep.subr.mxu0 0.0
        %290 = vmatpush1.xpose.msra.mxu0 0.0
        %291 = vmatprep.subr.mxu0 0.0
        %292 = vmatpush1.xpose.msra.mxu0 0.0
        %293 = vmatprep.subr.mxu0 0.0
        %294 = vmatpush1.xpose.msra.mxu0 0.0
        %295 = vmatprep.subr.mxu0 0.0
        %296 = vmatpush1.xpose.msra.mxu0 0.0
        %297 = vmatprep.subr.mxu0 0.0
        %298 = vmatpush1.xpose.msra.mxu0 0.0
        %299 = vmatprep.subr.mxu0 0.0
        %300 = vmatpush1.xpose.msra.mxu0 0.0
        %301 = vmatprep.subr.mxu0 0.0
        %302 = vmatpush1.xpose.msra.mxu0 0.0
        %303 = vmatprep.subr.mxu0 0.0
        %304 = vmatpush1.xpose.msra.mxu0 0.0
        %305 = vmatprep.subr.mxu0 0.0
        %306 = vmatpush1.xpose.msra.mxu0 0.0
        %307 = vmatprep.subr.mxu0 0.0
        %308 = vmatpush1.xpose.msra.mxu0 0.0
        %309 = vmatprep.mubr.f32.mxu0 0.0
        %310 = vmatmul.mubr.f32.gmra.mrb[0].mxu0 %v240
        %v311 = vpop.f32.mrb[0].mxu0
        %v312 = vadd.f32 %v235, %v311
        %v313 = vpop.f32.mrb[0].mxu0
        %314 = vdwg.mxu0
        %v315 = vld [vmem:[#allocation2] sm:$0x1]
        %vm316 = vcmask 57344
        %v317 = vsel %vm316, %v312, -inf
        %318 = vmax.xlane.f32.xlu0 %v317
        %v319 = vpop.xlane.xlu0 %318
        %v320 = vmax.f32 %v315, %v319
        %v321 = vsub.f32 %v315, %v320
        %v322 = vmul.f32 %v321, 1.442695
        %v323 = vpow.pop %v322
        %325 = vset.pattern.permute.xlu0 0
        %326 = vperm.xlu0 %325, %v320
        %v327 = vpop.permute.xlu0 %326
        %v329 = vlaneseq
        %v330 = vshrl.u32 %v329, 7
        %v331 = vsub.s32 0, %v330
        %v332 = vrot.slane %v327, %v331
        %v333 = vsub.f32 %v312, %v332
        %v334 = vmul.f32 %v333, 1.442695
        %v335 = vpow.pop %v334
        %v336 = vld [vmem:[#allocation3] sm:$0x1]
        %v337 = vmul.f32 %v323, %v336
        %v338 = vsel %vm316, %v335, 0.0
        %339 = vadd.xlane.f32.xlu0 %v338
        %v340 = vpop.xlane.xlu0 %339
        %v341 = vadd.f32 %v337, %v340
        %vm342 = vcmask 0
        %343 = vst.msk [vmem:[#allocation3] sm:$0x1] %vm342, %v341
        %v344 = vld [vmem:[#allocation4] sm:$0x1]
        %346 = vset.pattern.permute.xlu0 0
        %347 = vperm.xlu0 %346, %v323
        %v348 = vpop.permute.xlu0 %347
        %v350 = vlaneseq
        %v351 = vshrl.u32 %v350, 7
        %v352 = vsub.s32 0, %v351
        %v353 = vrot.slane %v348, %v352
        %v354 = vmul.f32 %v353, %v344
        %vm355 = vcmask 64512
        %v357 = vsel %vm355, %v335, 0
        %359 = vmatprep.subr.mxu0 0.0
        %360 = vmatpush1.msra.mxu0 %v236
        %361 = vmatprep.subr.mxu0 0.0
        %362 = vmatpush1.msra.mxu0 0.0
        %363 = vmatprep.subr.mxu0 0.0
        %364 = vmatpush1.msra.mxu0 0.0
        %365 = vmatprep.subr.mxu0 0.0
        %366 = vmatpush1.msra.mxu0 0.0
        %367 = vmatprep.subr.mxu0 0.0
        %368 = vmatpush1.msra.mxu0 0.0
        %369 = vmatprep.subr.mxu0 0.0
        %370 = vmatpush1.msra.mxu0 0.0
        %371 = vmatprep.subr.mxu0 0.0
        %372 = vmatpush1.msra.mxu0 0.0
        %373 = vmatprep.subr.mxu0 0.0
        %374 = vmatpush1.msra.mxu0 0.0
        %375 = vmatprep.subr.mxu0 0.0
        %376 = vmatpush1.msra.mxu0 0.0
        %377 = vmatprep.subr.mxu0 0.0
        %378 = vmatpush1.msra.mxu0 0.0
        %379 = vmatprep.subr.mxu0 0.0
        %380 = vmatpush1.msra.mxu0 0.0
        %381 = vmatprep.subr.mxu0 0.0
        %382 = vmatpush1.msra.mxu0 0.0
        %383 = vmatprep.subr.mxu0 0.0
        %384 = vmatpush1.msra.mxu0 0.0
        %385 = vmatprep.subr.mxu0 0.0
        %386 = vmatpush1.msra.mxu0 0.0
        %387 = vmatprep.subr.mxu0 0.0
        %388 = vmatpush1.msra.mxu0 0.0
        %389 = vmatprep.subr.mxu0 0.0
        %390 = vmatpush1.msra.mxu0 0.0
        %391 = vmatprep.subr.mxu0 0.0
        %392 = vmatpush1.msra.mxu0 0.0
        %393 = vmatprep.subr.mxu0 0.0
        %394 = vmatpush1.msra.mxu0 0.0
        %395 = vmatprep.subr.mxu0 0.0
        %396 = vmatpush1.msra.mxu0 0.0
        %397 = vmatprep.subr.mxu0 0.0
        %398 = vmatpush1.msra.mxu0 0.0
        %399 = vmatprep.subr.mxu0 0.0
        %400 = vmatpush1.msra.mxu0 0.0
        %401 = vmatprep.subr.mxu0 0.0
        %402 = vmatpush1.msra.mxu0 0.0
        %403 = vmatprep.subr.mxu0 0.0
        %404 = vmatpush1.msra.mxu0 0.0
        %405 = vmatprep.subr.mxu0 0.0
        %406 = vmatpush1.msra.mxu0 0.0
        %407 = vmatprep.subr.mxu0 0.0
        %408 = vmatpush1.msra.mxu0 0.0
        %409 = vmatprep.subr.mxu0 0.0
        %410 = vmatpush1.msra.mxu0 0.0
        %411 = vmatprep.subr.mxu0 0.0
        %412 = vmatpush1.msra.mxu0 0.0
        %413 = vmatprep.subr.mxu0 0.0
        %414 = vmatpush1.msra.mxu0 0.0
        %415 = vmatprep.subr.mxu0 0.0
        %416 = vmatpush1.msra.mxu0 0.0
        %417 = vmatprep.subr.mxu0 0.0
        %418 = vmatpush1.msra.mxu0 0.0
        %419 = vmatprep.subr.mxu0 0.0
        %420 = vmatpush1.msra.mxu0 0.0
        %421 = vmatprep.subr.mxu0 0.0
        %422 = vmatpush1.msra.mxu0 0.0
        %423 = vmatprep.mubr.f32.mxu0 0.0
        %424 = vmatmul.mubr.f32.gmra.mrb[0].mxu0 %v357
        %v425 = vpop.f32.mrb[0].mxu0
        %v426 = vadd.f32 0.0, %v425
        %v427 = vpop.f32.mrb[0].mxu0
        %428 = vdwg.mxu0
        %v429 = vadd.f32 %v354, %v426
        %vm430 = vcmask 253952
        %431 = vst.msk [vmem:[#allocation4] sm:$0x1] %vm430, %v429
        %432 = vst.msk [vmem:[#allocation2] sm:$0x1] %vm342, %v320
        // Predicated region
        $region41: #{tpu_custom_call.1} parent=31 // pred_check
          %p433 = pneg %p225
        $region42: #{tpu_custom_call.1} parent=31 // pred_check_branch
          %435 = sbr.rel (%p433) target = $region44
        $region43: #{tpu_custom_call.1} parent=31 // pred_region
          %v436 = vld [vmem:[#allocation3] sm:$0x1]
          %v437 = vrcp.pop %v436
          %v438 = vld [vmem:[#allocation4] sm:$0x1]
          %440 = vset.pattern.permute.xlu0 0
          %441 = vperm.xlu0 %440, %v437
          %v442 = vpop.permute.xlu0 %441
          %v444 = vlaneseq
          %v445 = vshrl.u32 %v444, 7
          %v446 = vsub.s32 0, %v445
          %v447 = vrot.slane %v442, %v446
          %v448 = vmul.f32 %v438, %v447
          %449 = vst.msk [vmem:[%s218] sm:$0x1] %vm430, %v448
        $region44: #{tpu_custom_call.1} parent=31 // pred_fallthru
          _
        %s450 = sand.u32 %s117, 1
        %s451 = scalar_lea.sflag [#allocation7], %s450
        %s452 = sand.u32 %s117, 1
        %s453 = scalar_lea.vmem [#allocation8], %s452
        // Predicated region
        $region45: #{tpu_custom_call.1} parent=31 // pred_check
          %p454 = pneg %p127
        $region46: #{tpu_custom_call.1} parent=31 // pred_check_branch
          %456 = sbr.rel (%p454) target = $region48
        $region47: #{tpu_custom_call.1} parent=31 // pred_region
          %s458 = ssub.s32 16, 16
          %459 = vsyncadd %s451, %s458
          %s460 = smul.addr %s24, 16
          %s461 = scalar_lea.hbm %s3, %s460
          %s463 = sshll.u32 %s453, 4
          %s464 = int_to_ptr.vmem [resolvable:$true] %s463
          %466 = dma.vmem_to_hbm [thread:$0]  %s464, 16, %s461, %s451
        $region48: #{tpu_custom_call.1} parent=31 // pred_fallthru
          _
      $region32: #{tpu_custom_call.1} parent=5 // pred_fallthru
        _
      %p467 = scmp.le.s32.totalorder 2, %s15
      // Predicated region
      $region49: #{tpu_custom_call.1} parent=5 // pred_check
        %p468 = pneg %p467
      $region50: #{tpu_custom_call.1} parent=5 // pred_check_branch
        %470 = sbr.rel (%p468) target = $region52
      $region51: #{tpu_custom_call.1} parent=5 // pred_region
        %s471 = ssub.s32 %s15, 2
        // Predicated region
        $region53: #{tpu_custom_call.1} parent=51 // pred_check
          %p472 = pneg %p133
        $region54: #{tpu_custom_call.1} parent=51 // pred_check_branch
          %474 = sbr.rel (%p472) target = $region56
        $region55: #{tpu_custom_call.1} parent=51 // pred_region
          %s475 = sand.u32 %s118, 1
          %s476 = scalar_lea.sflag [#allocation7], %s475
          %s477 = sand.u32 %s118, 1
          %s478 = scalar_lea.vmem [#allocation8], %s477
          %479 = dma.done %s476, 16
        $region56: #{tpu_custom_call.1} parent=51 // pred_fallthru
          _
      $region52: #{tpu_custom_call.1} parent=5 // pred_fallthru
        _
    $region6: #{tpu_custom_call.1} parent=1 // loop_footer
      %s19 = sadd.s32 1, %s15
    $region7: #{tpu_custom_call.1} parent=1 // loop_footer_branch
      %14 = sbr.rel target = $region3
    $region8: #{tpu_custom_call.1} parent=1 // loop_exit
      _
    %480 = vsyncpa [#allocation6], 1
    %s481 = scalar_lea.sflag [#allocation6], 1
    %482 = vsyncpa %s481, 1
    %483 = vsyncpa [#allocation7], 1
    %s484 = scalar_lea.sflag [#allocation7], 1
    %485 = vsyncpa %s484, 1

</llo_original>
